<compile_context>
chip_gen: v7x
topology: tpu7x:2x2x1
jax: 0.10.0
libtpu: 0.0.40
codegen_flags: <defaults>
</compile_context>

<pallas_src>
import jax
import jax.numpy as jnp
from jax.experimental import pallas as pl
from jax.experimental.pallas import tpu as pltpu

LANES = 128
SUBLANES = 8
MAX_ROWS = 1024  # 1024 x 128 f32 tile = 512 KiB per input per pipeline buffer


def _round_up(x, m):
    return ((x + m - 1) // m) * m


def _dice_kernel(p_ref, t_ref, loss_ref, acc_num, acc_den):
    # Grid axis 0 is a sequential reduction ("arbitrary"); the (8,128)
    # accumulators live in VMEM scratch and persist across grid iterations.
    @pl.when(pl.program_id(0) == 0)
    def _():
        acc_num[...] = jnp.zeros_like(acc_num)
        acc_den[...] = jnp.zeros_like(acc_den)

    p = p_ref[...]
    t = t_ref[...]
    # Cast in-kernel only if needed (free-ish VPU op; avoids 2x HBM bytes).
    if p.dtype != jnp.float32:
        p = p.astype(jnp.float32)
    if t.dtype != jnp.float32:
        t = t.astype(jnp.float32)

    rows = p.shape[0]
    # Fold the (rows,128) tile onto the (8,128) accumulator with VPU-only
    # vreg adds; the reshape matches the native (8,128) tiling (no copy).
    prod = (p * t).reshape(rows // SUBLANES, SUBLANES, LANES)
    both = (p + t).reshape(rows // SUBLANES, SUBLANES, LANES)
    acc_num[...] += jnp.sum(prod, axis=0)
    acc_den[...] += jnp.sum(both, axis=0)

    @pl.when(pl.program_id(0) == pl.num_programs(0) - 1)
    def _():
        # Single XLU reduction at the very end, then the scalar epilogue
        # in-kernel so the wrapper has no extra XLA ops.
        num = jnp.sum(acc_num[...], keepdims=True)  # (1, 1)
        den = jnp.sum(acc_den[...], keepdims=True)  # (1, 1)
        loss_ref[...] = 1.0 - (2.0 * num + 1.0) / (den + 1.0)


@jax.jit
def dice_loss(pred, target):
    """Pallas TPU implementation of Dice.forward(pred, target)."""
    p = pred.reshape(-1)
    t = target.reshape(-1)
    n = p.shape[0]

    # Pad only to a multiple of one (8,128) vreg tile; then pick a row tile
    # up to MAX_ROWS that divides the (possibly slightly re-padded) row count.
    n_rows = _round_up(-(-n // LANES), SUBLANES)
    grid = -(-n_rows // MAX_ROWS)
    row_tile = _round_up(-(-n_rows // grid), SUBLANES)
    n_rows_pad = row_tile * grid
    pad = n_rows_pad * LANES - n
    if pad:
        # Zero padding is exact: contributes 0 to both sum(p*t) and sum(p+t).
        p = jnp.pad(p, (0, pad))
        t = jnp.pad(t, (0, pad))
    p2 = p.reshape(n_rows_pad, LANES)
    t2 = t.reshape(n_rows_pad, LANES)

    # TODO(synk): for very large inputs on v7x, split the reduction across
    # both TensorCores (parallel leading grid axis + per-core partials).
    loss = pl.pallas_call(
        _dice_kernel,
        out_shape=jax.ShapeDtypeStruct((1, 1), jnp.float32),
        grid_spec=pltpu.PrefetchScalarGridSpec(
            num_scalar_prefetch=0,
            grid=(grid,),
            in_specs=[
                pl.BlockSpec((row_tile, LANES), lambda i: (i, 0)),
                pl.BlockSpec((row_tile, LANES), lambda i: (i, 0)),
            ],
            out_specs=pl.BlockSpec((1, 1), lambda i: (0, 0)),
            scratch_shapes=[
                pltpu.VMEM((SUBLANES, LANES), jnp.float32),
                pltpu.VMEM((SUBLANES, LANES), jnp.float32),
            ],
        ),
        compiler_params=pltpu.CompilerParams(
            dimension_semantics=("arbitrary",),
        ),
    )(p2, t2)
    return loss[0, 0]


if __name__ == "__main__":
    key = jax.random.PRNGKey(0)
    k1, k2 = jax.random.split(key)
    # Small NCHW shapes consistent with a segmentation-style Dice loss.
    pred = jax.random.uniform(k1, (2, 4, 16, 16), dtype=jnp.float32)
    target = (jax.random.uniform(k2, (2, 4, 16, 16)) > 0.5).astype(jnp.float32)

    loss = dice_loss(pred, target)
    jax.block_until_ready(loss)

    # Reference check against plain JAX (same math as the PyTorch module).
    ref = 1.0 - (2.0 * jnp.sum(pred * target) + 1.0) / (jnp.sum(pred + target) + 1.0)
    assert jnp.allclose(loss, ref, rtol=1e-5, atol=1e-5), (loss, ref)

    print("KERNEL_OK")
</pallas_src>

<mosaic_0001>
module attributes {stable_mosaic.version = 11 : i64} {
  func.func @_dice_kernel(%arg0: i32, %arg1: memref<16x128xf32, #tpu.memory_space<vmem>>, %arg2: memref<16x128xf32, #tpu.memory_space<vmem>>, %arg3: memref<1x1xf32, #tpu.memory_space<vmem>>, %arg4: memref<8x128xf32, #tpu.memory_space<vmem>>, %arg5: memref<8x128xf32, #tpu.memory_space<vmem>>) attributes {dimension_semantics = [#tpu.dimension_semantics<arbitrary>], iteration_bounds = array<i64: 1>, scalar_prefetch = 0 : i64, scratch_operands = 2 : i64, tpu.core_type = #tpu.core_type<tc>, window_params = [{transform_indices = @transform_0, window_bounds = array<i64: 16, 128>}, {transform_indices = @transform_1, window_bounds = array<i64: 16, 128>}, {pipeline_mode = #tpu.pipeline_mode<synchronous>, transform_indices = @transform_2, window_bounds = array<i64: 1, 1>}]} {
    %c0_i32 = arith.constant 0 : i32
    %0 = arith.cmpi eq, %arg0, %c0_i32 : i32
    %1 = arith.extui %0 : i1 to i32
    %c0_i32_0 = arith.constant 0 : i32
    %2 = arith.cmpi ne, %1, %c0_i32_0 : i32
    scf.if %2 {
      %cst_15 = arith.constant 0.000000e+00 : f32
      %20 = vector.broadcast %cst_15 : f32 to vector<8x128xf32>
      %c0_16 = arith.constant 0 : index
      %c0_17 = arith.constant 0 : index
      %21 = vector.load %arg4[%c0_16, %c0_17] : memref<8x128xf32, #tpu.memory_space<vmem>>, vector<8x128xf32>
      tpu.vector_store %arg4[%c0_16, %c0_17], %20 {strides = array<i32>} : memref<8x128xf32, #tpu.memory_space<vmem>>, vector<8x128xf32>,
      %cst_18 = arith.constant 0.000000e+00 : f32
      %22 = vector.broadcast %cst_18 : f32 to vector<8x128xf32>
      %c0_19 = arith.constant 0 : index
      %c0_20 = arith.constant 0 : index
      %23 = vector.load %arg5[%c0_19, %c0_20] : memref<8x128xf32, #tpu.memory_space<vmem>>, vector<8x128xf32>
      tpu.vector_store %arg5[%c0_19, %c0_20], %22 {strides = array<i32>} : memref<8x128xf32, #tpu.memory_space<vmem>>, vector<8x128xf32>,
    } else {
    }
    %c0 = arith.constant 0 : index
    %c0_1 = arith.constant 0 : index
    %3 = vector.load %arg1[%c0, %c0_1] : memref<16x128xf32, #tpu.memory_space<vmem>>, vector<16x128xf32>
    %c0_2 = arith.constant 0 : index
    %c0_3 = arith.constant 0 : index
    %4 = vector.load %arg2[%c0_2, %c0_3] : memref<16x128xf32, #tpu.memory_space<vmem>>, vector<16x128xf32>
    %5 = arith.mulf %3, %4 : vector<16x128xf32>
    %6 = vector.shape_cast %5 : vector<16x128xf32> to vector<2x8x128xf32>
    %7 = arith.addf %3, %4 : vector<16x128xf32>
    %8 = vector.shape_cast %7 : vector<16x128xf32> to vector<2x8x128xf32>
    %c0_4 = arith.constant 0 : index
    %c0_5 = arith.constant 0 : index
    %9 = vector.load %arg4[%c0_4, %c0_5] : memref<8x128xf32, #tpu.memory_space<vmem>>, vector<8x128xf32>
    %cst = arith.constant dense<0.000000e+00> : vector<8x128xf32>
    %10 = vector.multi_reduction <add>, %6, %cst [0] : vector<2x8x128xf32> to vector<8x128xf32>
    %11 = arith.addf %9, %10 : vector<8x128xf32>
    %c0_6 = arith.constant 0 : index
    %c0_7 = arith.constant 0 : index
    %12 = vector.load %arg4[%c0_6, %c0_7] : memref<8x128xf32, #tpu.memory_space<vmem>>, vector<8x128xf32>
    tpu.vector_store %arg4[%c0_6, %c0_7], %11 {strides = array<i32>} : memref<8x128xf32, #tpu.memory_space<vmem>>, vector<8x128xf32>,
    %c0_8 = arith.constant 0 : index
    %c0_9 = arith.constant 0 : index
    %13 = vector.load %arg5[%c0_8, %c0_9] : memref<8x128xf32, #tpu.memory_space<vmem>>, vector<8x128xf32>
    %cst_10 = arith.constant dense<0.000000e+00> : vector<8x128xf32>
    %14 = vector.multi_reduction <add>, %8, %cst_10 [0] : vector<2x8x128xf32> to vector<8x128xf32>
    %15 = arith.addf %13, %14 : vector<8x128xf32>
    %c0_11 = arith.constant 0 : index
    %c0_12 = arith.constant 0 : index
    %16 = vector.load %arg5[%c0_11, %c0_12] : memref<8x128xf32, #tpu.memory_space<vmem>>, vector<8x128xf32>
    tpu.vector_store %arg5[%c0_11, %c0_12], %15 {strides = array<i32>} : memref<8x128xf32, #tpu.memory_space<vmem>>, vector<8x128xf32>,
    %c0_i32_13 = arith.constant 0 : i32
    %17 = arith.cmpi eq, %arg0, %c0_i32_13 : i32
    %18 = arith.extui %17 : i1 to i32
    %c0_i32_14 = arith.constant 0 : i32
    %19 = arith.cmpi ne, %18, %c0_i32_14 : i32
    scf.if %19 {
      %c0_15 = arith.constant 0 : index
      %c0_16 = arith.constant 0 : index
      %20 = vector.load %arg4[%c0_15, %c0_16] : memref<8x128xf32, #tpu.memory_space<vmem>>, vector<8x128xf32>
      %21 = vector.shape_cast %20 : vector<8x128xf32> to vector<1x8x128xf32>
      %cst_17 = arith.constant dense<0.000000e+00> : vector<1xf32>
      %22 = vector.multi_reduction <add>, %21, %cst_17 [1, 2] : vector<1x8x128xf32> to vector<1xf32>
      %23 = vector.shape_cast %22 : vector<1xf32> to vector<1x1x1xf32>
      %24 = vector.extract %23[0, 0, 0] : f32 from vector<1x1x1xf32>
      %25 = vector.broadcast %24 : f32 to vector<1x1xf32>
      %c0_18 = arith.constant 0 : index
      %c0_19 = arith.constant 0 : index
      %26 = vector.load %arg5[%c0_18, %c0_19] : memref<8x128xf32, #tpu.memory_space<vmem>>, vector<8x128xf32>
      %27 = vector.shape_cast %26 : vector<8x128xf32> to vector<1x8x128xf32>
      %cst_20 = arith.constant dense<0.000000e+00> : vector<1xf32>
      %28 = vector.multi_reduction <add>, %27, %cst_20 [1, 2] : vector<1x8x128xf32> to vector<1xf32>
      %29 = vector.shape_cast %28 : vector<1xf32> to vector<1x1x1xf32>
      %30 = vector.extract %29[0, 0, 0] : f32 from vector<1x1x1xf32>
      %31 = vector.broadcast %30 : f32 to vector<1x1xf32>
      %cst_21 = arith.constant 2.000000e+00 : f32
      %32 = vector.broadcast %cst_21 : f32 to vector<1x1xf32>
      %33 = arith.mulf %32, %25 : vector<1x1xf32>
      %cst_22 = arith.constant 1.000000e+00 : f32
      %34 = vector.broadcast %cst_22 : f32 to vector<1x1xf32>
      %35 = arith.addf %33, %34 : vector<1x1xf32>
      %cst_23 = arith.constant 1.000000e+00 : f32
      %36 = vector.broadcast %cst_23 : f32 to vector<1x1xf32>
      %37 = arith.addf %31, %36 : vector<1x1xf32>
      %38 = arith.divf %35, %37 : vector<1x1xf32>
      %cst_24 = arith.constant 1.000000e+00 : f32
      %39 = vector.broadcast %cst_24 : f32 to vector<1x1xf32>
      %40 = arith.subf %39, %38 : vector<1x1xf32>
      %c0_25 = arith.constant 0 : index
      %c0_26 = arith.constant 0 : index
      %41 = vector.load %arg3[%c0_25, %c0_26] : memref<1x1xf32, #tpu.memory_space<vmem>>, vector<1x1xf32>
      tpu.vector_store %arg3[%c0_25, %c0_26], %40 {strides = array<i32>} : memref<1x1xf32, #tpu.memory_space<vmem>>, vector<1x1xf32>,
    } else {
    }
    return
  }
  func.func @transform_0(%arg0: i32) -> (i32, i32) {
    %c0_i32 = arith.constant 0 : i32
    %c0_i32_0 = arith.constant 0 : i32
    return %arg0, %c0_i32 : i32, i32
  }
  func.func @transform_1(%arg0: i32) -> (i32, i32) {
    %c0_i32 = arith.constant 0 : i32
    %c0_i32_0 = arith.constant 0 : i32
    return %arg0, %c0_i32 : i32, i32
  }
  func.func @transform_2(%arg0: i32) -> (i32, i32) {
    %c0_i32 = arith.constant 0 : i32
    %c0_i32_0 = arith.constant 0 : i32
    %c0_i32_1 = arith.constant 0 : i32
    return %c0_i32, %c0_i32_0 : i32, i32
  }
}

</mosaic_0001>

<llo_original>
// kernel: dice_loss.1
$region0: #{dice_loss.1}
  #allocation0 [shape = 'u32[]', space=smem, size = 0x4, offset = 0x4, fixed_abs, tag = 'smem constant byte address 0x4 - core index']
  #allocation1 [shape = 'u32[144,128]{1,0:T(1,128)}', space=vmem, size = 0x12000, scoped, tag = 'internal scratch']
  #allocation2 [shape = 'f32[8,128]{1,0:T(8,128)}', space=vmem, size = 0x1000, scoped, tag = 'scratch operand']
  #allocation3 [shape = 'f32[8,128]{1,0:T(8,128)}', space=vmem, size = 0x1000, scoped, tag = 'scratch operand']
  %s0 = inlined_call_operand.vmem [shape: f32[16,128], index: 0, kind: input, shape index: {}]
  %s1 = inlined_call_operand.vmem [shape: f32[16,128], index: 1, kind: input, shape index: {}]
  %s2 = inlined_call_operand.hbm [shape: f32[1,1], index: 2, kind: output, shape index: {}]
  %s3 = sld [smem:[#allocation0]]
  $region26: #{dice_loss.1} parent=0
    _
  %s5 = ssub.s32 1, %s3
  %s6 = scalar_select 0, %s5, %s3
  $region1: #{dice_loss.1} parent=0
    #allocation4 [shape = 'u8[512]{0}', space=vmem, size = 0x400, scoped, tag = 'output window, operand 0, single buffered']
    #allocation5 [shape = 's32[1]{0}', space=sflag, size = 0x4, scoped, tag = 'scoped memory for dice_loss.1']
    %7 = vsyncpa [#allocation5], 0
    // Predicated region
    $region2: #{dice_loss.1} parent=1 // pred_check
      _
    $region3: #{dice_loss.1} parent=1 // pred_check_branch
      %9 = sbr.rel (0) target = $region5
    $region4: #{dice_loss.1} parent=1 // pred_region
      _
    $region5: #{dice_loss.1} parent=1 // pred_fallthru
      _
    // Predicated region
    $region6: #{dice_loss.1} parent=1 // pred_check
      _
    $region7: #{dice_loss.1} parent=1 // pred_check_branch
      %11 = sbr.rel (0) target = $region9
    $region8: #{dice_loss.1} parent=1 // pred_region
      _
    $region9: #{dice_loss.1} parent=1 // pred_fallthru
      _
    %p12 = scmp.eq.s32.totalorder 0, 0
    // Predicated region
    $region10: #{dice_loss.1} parent=1 // pred_check
      %p13 = pneg %p12
    $region11: #{dice_loss.1} parent=1 // pred_check_branch
      %15 = sbr.rel (%p13) target = $region13
    $region12: #{dice_loss.1} parent=1 // pred_region
      %16 = vst [vmem:[#allocation2] sm:$0xff] 0.0
      %17 = vst [vmem:[#allocation3] sm:$0xff] 0.0
    $region13: #{dice_loss.1} parent=1 // pred_fallthru
      _
    %v18 = vld [vmem:[%s0] sm:$0xff]
    %v19 = vld [vmem:[%s0 + $0x8] sm:$0xff]
    %v20 = vld [vmem:[%s1] sm:$0xff]
    %v21 = vld [vmem:[%s1 + $0x8] sm:$0xff]
    %v22 = vmul.f32 %v18, %v20
    %v23 = vmul.f32 %v19, %v21
    %v24 = vadd.f32 %v18, %v20
    %v25 = vadd.f32 %v19, %v21
    %v26 = vld [vmem:[#allocation2] sm:$0xff]
    %v27 = vadd.f32 %v22, %v23
    %v28 = vadd.f32 %v26, %v27
    %29 = vst [vmem:[#allocation2] sm:$0xff] %v28
    %v30 = vld [vmem:[#allocation3] sm:$0xff]
    %v31 = vadd.f32 %v24, %v25
    %v32 = vadd.f32 %v30, %v31
    %33 = vst [vmem:[#allocation3] sm:$0xff] %v32
    // Predicated region
    $region14: #{dice_loss.1} parent=1 // pred_check
      %p34 = pneg %p12
    $region15: #{dice_loss.1} parent=1 // pred_check_branch
      %36 = sbr.rel (%p34) target = $region17
    $region16: #{dice_loss.1} parent=1 // pred_region
      %v37 = vld [vmem:[#allocation2] sm:$0xff]
      %38 = vadd.xlane.f32.xlu0 %v37
      %v39 = vpop.xlane.xlu0 %38
      %v40 = vrot.slane %v39, 4
      %v41 = vadd.f32 %v39, %v40
      %v42 = vrot.slane %v41, 2
      %v43 = vadd.f32 %v41, %v42
      %v44 = vrot.slane %v43, 1
      %v45 = vadd.f32 %v43, %v44
      %s46 = vtos %v45
      %v47 = vstv %s46
      %v48 = vld [vmem:[#allocation3] sm:$0xff]
      %49 = vadd.xlane.f32.xlu0 %v48
      %v50 = vpop.xlane.xlu0 %49
      %v51 = vrot.slane %v50, 4
      %v52 = vadd.f32 %v50, %v51
      %v53 = vrot.slane %v52, 2
      %v54 = vadd.f32 %v52, %v53
      %v55 = vrot.slane %v54, 1
      %v56 = vadd.f32 %v54, %v55
      %s57 = vtos %v56
      %v58 = vstv %s57
      %v59 = vmul.f32 %v47, 2.0
      %v60 = vadd.f32 %v59, 1.0
      %v61 = vadd.f32 %v58, 1.0
      %v62 = vrcp.pop %v61
      %v63 = vmul.f32 %v60, %v62
      %v64 = vsub.f32 1.0, %v63
      %vm65 = vcmask 0
      %66 = vst.msk [vmem:[#allocation4] sm:$0x1] %vm65, %v64
    $region17: #{dice_loss.1} parent=1 // pred_fallthru
      _
    // Predicated region
    $region18: #{dice_loss.1} parent=1 // pred_check
      _
    $region19: #{dice_loss.1} parent=1 // pred_check_branch
      %68 = sbr.rel (0) target = $region21
    $region20: #{dice_loss.1} parent=1 // pred_region
      %s70 = ssub.s32 16, 16
      %71 = vsyncadd [#allocation5], %s70
      %s73 = sshll.u32 [#allocation4], 4
      %s74 = int_to_ptr.vmem [resolvable:$true] %s73
      %76 = dma.vmem_to_hbm [thread:$0]  %s74, 16, %s2, [#allocation5]
    $region21: #{dice_loss.1} parent=1 // pred_fallthru
      _
    // Predicated region
    $region22: #{dice_loss.1} parent=1 // pred_check
      _
    $region23: #{dice_loss.1} parent=1 // pred_check_branch
      %78 = sbr.rel (0) target = $region25
    $region24: #{dice_loss.1} parent=1 // pred_region
      %79 = dma.done [#allocation5], 16
    $region25: #{dice_loss.1} parent=1 // pred_fallthru
      _
    %80 = vsyncpa [#allocation5], 1

</llo_original>
